<compile_context>
chip_gen: v6e
topology: v6e:2x2x1
jax: 0.10.0
libtpu: 0.0.40
codegen_flags: <defaults>
</compile_context>

<pallas_src>
import functools

import jax
import jax.numpy as jnp
from jax.experimental import pallas as pl
from jax.experimental.pallas import tpu as pltpu

LN_EPS = 1e-5  # nn.LayerNorm default eps


# ----------------------------------------------------------------------------
# Tiling helpers
# ----------------------------------------------------------------------------
def _round_up(x, m):
    return ((x + m - 1) // m) * m


def _choose_tile(n, target, multiple=8, min_tiles=2):
    """Tile length t for a dimension of size n.

    Guarantees: t % multiple == 0 (or t == n when n <= multiple), t <= target,
    and — when n is large enough — at least `min_tiles` grid steps so both v7x
    TensorCores get work.  An exact divisor of n is preferred (no masked tail);
    otherwise the caller uses a pl.cdiv grid and Pallas masks the last tile.
    """
    if n <= multiple:
        return n
    cap = max(multiple, min(target, _round_up(pl.cdiv(n, min_tiles), multiple)))
    cap = (cap // multiple) * multiple
    t = cap
    while t >= multiple:
        if n % t == 0:
            return t
        t -= multiple
    return cap  # no exact divisor: cdiv grid + masked last tile


def _compiler_params(semantics, vmem_limit_bytes):
    kwargs = dict(dimension_semantics=semantics)
    if vmem_limit_bytes is not None:
        kwargs["vmem_limit_bytes"] = vmem_limit_bytes
    return pltpu.CompilerParams(**kwargs)


# ----------------------------------------------------------------------------
# Kernel 1: channel_sum_cat — layer-sum (grid reduction) + LN + Linear + concat.
# ----------------------------------------------------------------------------
def _sum_ln_linear_cat_kernel(hs_ref, sel_ref, w_ref, p_ref, out_ref, acc_ref):
    # hs_ref : (1, tm, D)   one layer's slab for this token tile (wire dtype)
    # sel_ref: (tm, D)      selected_features tile (passthrough)
    # w_ref  : (D, D)       linear weight, transposed, bf16 (y = x @ w)
    # p_ref  : (8, D) f32   packed params: row0=bias, row1=gamma, row2=beta
    # out_ref: (tm, 2*D)    [selected | projection]
    # acc_ref: (tm, D) f32  layer-sum accumulator (resident across grid axis 1)
    k = pl.program_id(1)

    @pl.when(k == 0)
    def _init():
        acc_ref[...] = jnp.zeros_like(acc_ref)

    acc_ref[...] += hs_ref[0].astype(jnp.float32)

    @pl.when(k == pl.num_programs(1) - 1)
    def _finalize():
        d = sel_ref.shape[-1]
        x = acc_ref[...]
        mean = jnp.mean(x, axis=-1, keepdims=True)
        xc = x - mean
        var = jnp.mean(xc * xc, axis=-1, keepdims=True)
        xn = xc * jax.lax.rsqrt(var + LN_EPS)
        xn = xn * p_ref[1:2, :] + p_ref[2:3, :]
        # bf16 MXU operands, f32 accumulation (native MXU path on all
        # generations).  NOTE: diverges slightly from PyTorch's f32 Linear;
        # error grows ~sqrt(D) with the contraction length.
        y = jnp.dot(xn.astype(jnp.bfloat16), w_ref[...],
                    preferred_element_type=jnp.float32) + p_ref[0:1, :]
        # Two lane-aligned sub-slice stores: no (tm, 2D) concat temporary and
        # no f32 round-trip of the passthrough half.
        out_ref[:, :d] = sel_ref[...].astype(out_ref.dtype)
        out_ref[:, d:] = y.astype(out_ref.dtype)


def channel_sum_cat(hidden_states, selected_features, w_t, b, gamma, beta, *,
                    tm_target=512, wire_dtype=None, vmem_limit_bytes=None):
    """hidden_states: (L, B, S, D); selected_features: (B, S, D).

    Returns (B, S, 2*D) = concat(selected, Linear(LN(sum_L hs)), axis=-1).

    With L as a grid reduction axis the dominant double-buffered block is
    (1, tm, D), so tm_target=512 fits the default scoped-VMEM limit on every
    generation (incl. v7x); raise tm_target / vmem_limit_bytes on v5e/v6e.
    For bandwidth-bound deployments pass hidden_states in bf16 (or set
    wire_dtype=jnp.bfloat16) — the kernel accumulates in f32 regardless.
    """
    L, B, S, D = hidden_states.shape
    N = B * S
    hs = hidden_states.reshape(L, N, D)
    if wire_dtype is not None and hs.dtype != wire_dtype:
        hs = hs.astype(wire_dtype)
    sel = selected_features.reshape(N, D)

    tm = _choose_tile(N, tm_target, 8)
    grid_m = pl.cdiv(N, tm)

    # Pack bias / gamma / beta into one (8, D) operand (they pad to 8 sublanes
    # individually anyway): fewer DMA descriptors and buffers.
    params = (jnp.zeros((8, D), jnp.float32)
              .at[0].set(b.astype(jnp.float32))
              .at[1].set(gamma.astype(jnp.float32))
              .at[2].set(beta.astype(jnp.float32)))

    out = pl.pallas_call(
        _sum_ln_linear_cat_kernel,
        out_shape=jax.ShapeDtypeStruct((N, 2 * D), selected_features.dtype),
        grid_spec=pltpu.PrefetchScalarGridSpec(
            num_scalar_prefetch=0,
            grid=(grid_m, L),
            in_specs=[
                pl.BlockSpec((1, tm, D), lambda i, k: (k, i, 0)),
                pl.BlockSpec((tm, D), lambda i, k: (i, 0)),
                pl.BlockSpec((D, D), lambda i, k: (0, 0)),
                pl.BlockSpec((8, D), lambda i, k: (0, 0)),
            ],
            out_specs=pl.BlockSpec((tm, 2 * D), lambda i, k: (i, 0)),
            scratch_shapes=[pltpu.VMEM((tm, D), jnp.float32)],
        ),
        compiler_params=_compiler_params(("parallel", "arbitrary"),
                                         vmem_limit_bytes),
    )(hs, sel, w_t.astype(jnp.bfloat16), params)
    return out.reshape(B, S, 2 * D)


# ----------------------------------------------------------------------------
# Kernel 2: channel_cat — layer-mean (grid reduction) + fused channel concat.
# ----------------------------------------------------------------------------
def _mean_cat_kernel(hs_ref, sel_ref, out_ref, acc_ref, *, n_layers):
    # hs_ref: (1, tm, D); sel_ref: (tm, D); out_ref: (tm, 2*D); acc: (tm, D) f32
    k = pl.program_id(1)

    @pl.when(k == 0)
    def _init():
        acc_ref[...] = jnp.zeros_like(acc_ref)

    acc_ref[...] += hs_ref[0].astype(jnp.float32)

    @pl.when(k == pl.num_programs(1) - 1)
    def _finalize():
        d = sel_ref.shape[-1]
        out_ref[:, :d] = sel_ref[...].astype(out_ref.dtype)
        out_ref[:, d:] = (acc_ref[...] * (1.0 / n_layers)).astype(out_ref.dtype)


def channel_cat(hidden_states, selected_features, *,
                tm_target=512, wire_dtype=None, vmem_limit_bytes=None):
    """(B, S, 2*D) = concat(selected, mean_L(hidden_states), axis=-1), fused so
    the layer mean never round-trips HBM before the concat."""
    L, B, S, D = hidden_states.shape
    N = B * S
    hs = hidden_states.reshape(L, N, D)
    if wire_dtype is not None and hs.dtype != wire_dtype:
        hs = hs.astype(wire_dtype)
    sel = selected_features.reshape(N, D)

    tm = _choose_tile(N, tm_target, 8)
    grid_m = pl.cdiv(N, tm)

    out = pl.pallas_call(
        functools.partial(_mean_cat_kernel, n_layers=L),
        out_shape=jax.ShapeDtypeStruct((N, 2 * D), selected_features.dtype),
        grid_spec=pltpu.PrefetchScalarGridSpec(
            num_scalar_prefetch=0,
            grid=(grid_m, L),
            in_specs=[
                pl.BlockSpec((1, tm, D), lambda i, k: (k, i, 0)),
                pl.BlockSpec((tm, D), lambda i, k: (i, 0)),
            ],
            out_specs=pl.BlockSpec((tm, 2 * D), lambda i, k: (i, 0)),
            scratch_shapes=[pltpu.VMEM((tm, D), jnp.float32)],
        ),
        compiler_params=_compiler_params(("parallel", "arbitrary"),
                                         vmem_limit_bytes),
    )(hs, sel)
    return out.reshape(B, S, 2 * D)


# ----------------------------------------------------------------------------
# Kernel 3: token_cat — layer-mean (grid reduction) + AvgPool1d(kernel=8, stride=8).
# ----------------------------------------------------------------------------
def _mean_pool_k8_kernel(hs_ref, o_ref, acc_ref, *, n_layers):
    # hs_ref: (1, 1, 8*TP, D)  one layer's slab for this (batch, pooled tile)
    # o_ref : (1, TP, D)       pooled output tile
    # acc   : (TP, D) f32      window+layer sum accumulator
    k = pl.program_id(2)

    @pl.when(k == 0)
    def _init():
        acc_ref[...] = jnp.zeros_like(acc_ref)

    x = hs_ref[0, 0].astype(jnp.float32)               # (8*TP, D)
    ts, d = x.shape
    # 8-token windows map onto the sublane axis -> cheap intra-vreg reduction.
    acc_ref[...] += jnp.sum(x.reshape(ts // 8, 8, d), axis=1)

    @pl.when(k == pl.num_programs(2) - 1)
    def _finalize():
        tp = acc_ref.shape[0]
        o_ref[...] = (acc_ref[...] * (1.0 / (8.0 * n_layers))
                      ).reshape(1, tp, d).astype(o_ref.dtype)


def mean_then_avg_pool_k8(hidden_states, *, tp_target=128, wire_dtype=None,
                          vmem_limit_bytes=None):
    """hidden_states: (L, B, S, D).

    Returns (B, S//8, D) = AvgPool1d(k=8, s=8)(mean over L).  Like PyTorch's
    AvgPool1d, any trailing S % 8 tokens are truncated.  The (B, S, D) layer
    mean never hits HBM.  tp_target is the pooled-token tile (input token tile
    is 8x that); raise tp_target / vmem_limit_bytes on v5e/v6e for bigger tiles.
    """
    L, B, S, D = hidden_states.shape
    P = S // 8
    if P < 1:
        raise ValueError(f"token_cat requires S >= 8, got S={S}")
    hs = hidden_states
    if wire_dtype is not None and hs.dtype != wire_dtype:
        hs = hs.astype(wire_dtype)

    TP = _choose_tile(P, tp_target, 8)   # pooled-token tile
    TS = 8 * TP                          # input-token tile (always mult. of 8)
    grid_t = pl.cdiv(P, TP)

    return pl.pallas_call(
        functools.partial(_mean_pool_k8_kernel, n_layers=L),
        out_shape=jax.ShapeDtypeStruct((B, P, D), hidden_states.dtype),
        grid_spec=pltpu.PrefetchScalarGridSpec(
            num_scalar_prefetch=0,
            grid=(B, grid_t, L),
            in_specs=[pl.BlockSpec((1, 1, TS, D), lambda b, t, k: (k, b, t, 0))],
            out_specs=pl.BlockSpec((1, TP, D), lambda b, t, k: (b, t, 0)),
            scratch_shapes=[pltpu.VMEM((TP, D), jnp.float32)],
        ),
        compiler_params=_compiler_params(("parallel", "parallel", "arbitrary"),
                                         vmem_limit_bytes),
    )(hs)


# ----------------------------------------------------------------------------
# DenseConnector forward
# ----------------------------------------------------------------------------
def dense_connector_forward(dense_connector_type, image_forward_outs,
                            selected_features, params=None, **kwargs):
    if dense_connector_type == "token_cat":
        pooled = mean_then_avg_pool_k8(image_forward_outs, **kwargs)
        # TODO(synk): if this concat shows up in profiles, write pooled directly
        # into a preallocated (B, S + S//8, D) slab inside the kernel instead.
        return jnp.concatenate([selected_features, pooled], axis=1)
    elif dense_connector_type == "channel_cat":
        return channel_cat(image_forward_outs, selected_features, **kwargs)
    elif dense_connector_type == "channel_sum_cat":
        return channel_sum_cat(
            image_forward_outs, selected_features,
            params["w_t"], params["b"], params["gamma"], params["beta"],
            **kwargs)
    else:
        raise ValueError(f"Unknown dense connector type: {dense_connector_type}")


# ----------------------------------------------------------------------------
# Pure-JAX references for correctness checking
# ----------------------------------------------------------------------------
def _ref_channel_sum_cat(image_forward_outs, selected_features, params):
    x = jnp.sum(image_forward_outs.astype(jnp.float32), axis=0)
    mean = jnp.mean(x, axis=-1, keepdims=True)
    var = jnp.mean((x - mean) ** 2, axis=-1, keepdims=True)
    xn = (x - mean) / jnp.sqrt(var + LN_EPS)
    xn = xn * params["gamma"] + params["beta"]
    y = xn @ params["w_t"] + params["b"]
    return jnp.concatenate(
        [selected_features, y.astype(selected_features.dtype)], axis=-1)


def _ref_channel_cat(image_forward_outs, selected_features):
    feats = jnp.mean(image_forward_outs.astype(jnp.float32), axis=0)
    return jnp.concatenate(
        [selected_features, feats.astype(selected_features.dtype)], axis=-1)


def _ref_token_cat(image_forward_outs, selected_features):
    feats = jnp.mean(image_forward_outs.astype(jnp.float32), axis=0)
    B, S, D = feats.shape
    P = S // 8
    pooled = jnp.mean(feats[:, :P * 8, :].reshape(B, P, 8, D), axis=2)
    pooled = pooled.astype(selected_features.dtype)
    return jnp.concatenate([selected_features, pooled], axis=1)


# ----------------------------------------------------------------------------
# Main
# ----------------------------------------------------------------------------
if __name__ == "__main__":
    # Small correctness-only shapes; production D should be a multiple of 128
    # (e.g. 1024 / 1152) for lane-dense stores and unpadded MXU tiles.
    L, B, S, D = 4, 2, 16, 32  # mm_hidden_size = D = 32

    key = jax.random.PRNGKey(0)
    k_hs, k_sel, k_w, k_b, k_g, k_beta, k_hs2, k_sel2 = jax.random.split(key, 8)

    image_forward_outs = jax.random.normal(k_hs, (L, B, S, D), dtype=jnp.float32)
    selected_features = jax.random.normal(k_sel, (B, S, D), dtype=jnp.float32)

    # Deterministic parameter init (shapes from __init__):
    #   dc_ln  = nn.LayerNorm(D)   -> gamma (D,), beta (D,)
    #   dc_lin = nn.Linear(D, D)   -> weight (D, D), bias (D,)
    w = jax.random.normal(k_w, (D, D), dtype=jnp.float32) * 0.05  # (out, in)
    b = jax.random.normal(k_b, (D,), dtype=jnp.float32) * 0.01
    params = {
        "w_t": w.T,                       # so kernel computes x @ W^T + b
        "b": b,
        "gamma": 1.0 + 0.1 * jax.random.normal(k_g, (D,), dtype=jnp.float32),
        "beta": 0.05 * jax.random.normal(k_beta, (D,), dtype=jnp.float32),
    }

    # channel_sum_cat (layer-sum grid reduction + LN + bf16 Linear + concat),
    # exercised with both the f32 wire and the bf16 wire.
    ref_csc = _ref_channel_sum_cat(image_forward_outs, selected_features, params)
    csc_tol = 2e-2 * max(1.0, (D / 256.0) ** 0.5)   # bf16 error grows ~sqrt(D)
    for wire in (None, jnp.bfloat16):
        out_csc = dense_connector_forward(
            "channel_sum_cat", image_forward_outs, selected_features, params,
            wire_dtype=wire)
        out_csc = jax.block_until_ready(out_csc)
        assert out_csc.shape == (B, S, 2 * D)
        assert jnp.allclose(out_csc, ref_csc, atol=csc_tol, rtol=csc_tol)

    # channel_cat (layer-mean grid reduction + fused channel concat kernel)
    out_cc = jax.block_until_ready(dense_connector_forward(
        "channel_cat", image_forward_outs, selected_features, params))
    ref_cc = _ref_channel_cat(image_forward_outs, selected_features)
    assert out_cc.shape == (B, S, 2 * D)
    assert jnp.allclose(out_cc, ref_cc, atol=1e-5, rtol=1e-5)

    # token_cat (layer-mean grid reduction + AvgPool1d(8, 8) kernel)
    out_tc = jax.block_until_ready(dense_connector_forward(
        "token_cat", image_forward_outs, selected_features, params))
    ref_tc = _ref_token_cat(image_forward_outs, selected_features)
    assert out_tc.shape == (B, S + S // 8, D)
    assert jnp.allclose(out_tc, ref_tc, atol=1e-4, rtol=1e-5)

    # token_cat with ragged S (PyTorch AvgPool1d silently truncates S % 8)
    S_r = 20
    ifo_r = jax.random.normal(k_hs2, (L, B, S_r, D), dtype=jnp.float32)
    sel_r = jax.random.normal(k_sel2, (B, S_r, D), dtype=jnp.float32)
    out_tcr = jax.block_until_ready(dense_connector_forward(
        "token_cat", ifo_r, sel_r, params))
    ref_tcr = _ref_token_cat(ifo_r, sel_r)
    assert out_tcr.shape == (B, S_r + S_r // 8, D)
    assert jnp.allclose(out_tcr, ref_tcr, atol=1e-4, rtol=1e-5)

    print("KERNEL_OK")
</pallas_src>

<mosaic_0001>
module attributes {stable_mosaic.version = 11 : i64} {
  func.func @_sum_ln_linear_cat_kernel(%arg0: i32, %arg1: i32, %arg2: memref<1x16x32xf32, #tpu.memory_space<vmem>>, %arg3: memref<16x32xf32, #tpu.memory_space<vmem>>, %arg4: memref<32x32xbf16, #tpu.memory_space<vmem>>, %arg5: memref<8x32xf32, #tpu.memory_space<vmem>>, %arg6: memref<16x64xf32, #tpu.memory_space<vmem>>, %arg7: memref<16x32xf32, #tpu.memory_space<vmem>>) attributes {dimension_semantics = [#tpu.dimension_semantics<parallel>, #tpu.dimension_semantics<arbitrary>], iteration_bounds = array<i64: 2, 4>, scalar_prefetch = 0 : i64, scratch_operands = 1 : i64, tpu.core_type = #tpu.core_type<tc>, window_params = [{transform_indices = @transform_0, window_bounds = array<i64: 1, 16, 32>}, {transform_indices = @transform_1, window_bounds = array<i64: 16, 32>}, {pipeline_mode = #tpu.pipeline_mode<synchronous>, transform_indices = @transform_2, window_bounds = array<i64: 32, 32>}, {pipeline_mode = #tpu.pipeline_mode<synchronous>, transform_indices = @transform_3, window_bounds = array<i64: 8, 32>}, {transform_indices = @transform_4, window_bounds = array<i64: 16, 64>}]} {
    %c0_i32 = arith.constant 0 : i32
    %0 = arith.cmpi eq, %arg1, %c0_i32 : i32
    %1 = arith.extui %0 : i1 to i32
    %c0_i32_0 = arith.constant 0 : i32
    %2 = arith.cmpi ne, %1, %c0_i32_0 : i32
    scf.if %2 {
      %cst = arith.constant 0.000000e+00 : f32
      %11 = vector.broadcast %cst : f32 to vector<16x32xf32>
      %c0_8 = arith.constant 0 : index
      %c0_9 = arith.constant 0 : index
      %12 = vector.load %arg7[%c0_8, %c0_9] : memref<16x32xf32, #tpu.memory_space<vmem>>, vector<16x32xf32>
      tpu.vector_store %arg7[%c0_8, %c0_9], %11 {strides = array<i32>} : memref<16x32xf32, #tpu.memory_space<vmem>>, vector<16x32xf32>,
    } else {
    }
    %c0 = arith.constant 0 : index
    %c0_1 = arith.constant 0 : index
    %3 = vector.load %arg7[%c0, %c0_1] : memref<16x32xf32, #tpu.memory_space<vmem>>, vector<16x32xf32>
    %c0_2 = arith.constant 0 : index
    %c0_3 = arith.constant 0 : index
    %c0_4 = arith.constant 0 : index
    %4 = vector.load %arg2[%c0_2, %c0_3, %c0_4] : memref<1x16x32xf32, #tpu.memory_space<vmem>>, vector<1x16x32xf32>
    %5 = vector.shape_cast %4 : vector<1x16x32xf32> to vector<16x32xf32>
    %6 = arith.addf %3, %5 : vector<16x32xf32>
    %c0_5 = arith.constant 0 : index
    %c0_6 = arith.constant 0 : index
    %7 = vector.load %arg7[%c0_5, %c0_6] : memref<16x32xf32, #tpu.memory_space<vmem>>, vector<16x32xf32>
    tpu.vector_store %arg7[%c0_5, %c0_6], %6 {strides = array<i32>} : memref<16x32xf32, #tpu.memory_space<vmem>>, vector<16x32xf32>,
    %c3_i32 = arith.constant 3 : i32
    %8 = arith.cmpi eq, %arg1, %c3_i32 : i32
    %9 = arith.extui %8 : i1 to i32
    %c0_i32_7 = arith.constant 0 : i32
    %10 = arith.cmpi ne, %9, %c0_i32_7 : i32
    scf.if %10 {
      %c0_8 = arith.constant 0 : index
      %c0_9 = arith.constant 0 : index
      %11 = vector.load %arg7[%c0_8, %c0_9] : memref<16x32xf32, #tpu.memory_space<vmem>>, vector<16x32xf32>
      %cst = arith.constant dense<0.000000e+00> : vector<16xf32>
      %12 = vector.multi_reduction <add>, %11, %cst [1] : vector<16x32xf32> to vector<16xf32>
      %13 = vector.shape_cast %12 : vector<16xf32> to vector<16x1xf32>
      %cst_10 = arith.constant 3.200000e+01 : f32
      %14 = vector.broadcast %cst_10 : f32 to vector<16x1xf32>
      %15 = arith.divf %13, %14 : vector<16x1xf32>
      %16 = vector.broadcast %15 : vector<16x1xf32> to vector<16x32xf32>
      %17 = arith.subf %11, %16 : vector<16x32xf32>
      %18 = arith.mulf %17, %17 : vector<16x32xf32>
      %cst_11 = arith.constant dense<0.000000e+00> : vector<16xf32>
      %19 = vector.multi_reduction <add>, %18, %cst_11 [1] : vector<16x32xf32> to vector<16xf32>
      %20 = vector.shape_cast %19 : vector<16xf32> to vector<16x1xf32>
      %cst_12 = arith.constant 3.200000e+01 : f32
      %21 = vector.broadcast %cst_12 : f32 to vector<16x1xf32>
      %22 = arith.divf %20, %21 : vector<16x1xf32>
      %cst_13 = arith.constant 9.99999974E-6 : f32
      %23 = vector.broadcast %cst_13 : f32 to vector<16x1xf32>
      %24 = arith.addf %22, %23 : vector<16x1xf32>
      %25 = math.rsqrt %24 : vector<16x1xf32>
      %26 = vector.broadcast %25 : vector<16x1xf32> to vector<16x32xf32>
      %27 = arith.mulf %17, %26 : vector<16x32xf32>
      %c1 = arith.constant 1 : index
      %c0_14 = arith.constant 0 : index
      %28 = vector.load %arg5[%c1, %c0_14] : memref<8x32xf32, #tpu.memory_space<vmem>>, vector<1x32xf32>
      %29 = vector.broadcast %28 : vector<1x32xf32> to vector<16x32xf32>
      %30 = arith.mulf %27, %29 : vector<16x32xf32>
      %c2 = arith.constant 2 : index
      %c0_15 = arith.constant 0 : index
      %31 = vector.load %arg5[%c2, %c0_15] : memref<8x32xf32, #tpu.memory_space<vmem>>, vector<1x32xf32>
      %32 = vector.broadcast %31 : vector<1x32xf32> to vector<16x32xf32>
      %33 = arith.addf %30, %32 : vector<16x32xf32>
      %34 = arith.truncf %33 : vector<16x32xf32> to vector<16x32xbf16>
      %c0_16 = arith.constant 0 : index
      %c0_17 = arith.constant 0 : index
      %35 = vector.load %arg4[%c0_16, %c0_17] : memref<32x32xbf16, #tpu.memory_space<vmem>>, vector<32x32xbf16>
      %cst_18 = arith.constant dense<0.000000e+00> : vector<16x32xf32>
      %36 = tpu.matmul %34, %35, %cst_18 {dimension_numbers = #tpu.dot_dimension_numbers<[1], [0], [0], [1], [0, 0, 1, 1], [], []>} : vector<16x32xbf16>, vector<32x32xbf16>, vector<16x32xf32> -> vector<16x32xf32>
      %c0_19 = arith.constant 0 : index
      %c0_20 = arith.constant 0 : index
      %37 = vector.load %arg5[%c0_19, %c0_20] : memref<8x32xf32, #tpu.memory_space<vmem>>, vector<1x32xf32>
      %38 = vector.broadcast %37 : vector<1x32xf32> to vector<16x32xf32>
      %39 = arith.addf %36, %38 : vector<16x32xf32>
      %c0_21 = arith.constant 0 : index
      %c0_22 = arith.constant 0 : index
      %40 = vector.load %arg3[%c0_21, %c0_22] : memref<16x32xf32, #tpu.memory_space<vmem>>, vector<16x32xf32>
      %c0_23 = arith.constant 0 : index
      %c0_24 = arith.constant 0 : index
      %41 = vector.load %arg6[%c0_23, %c0_24] : memref<16x64xf32, #tpu.memory_space<vmem>>, vector<16x32xf32>
      tpu.vector_store %arg6[%c0_23, %c0_24], %40 {strides = array<i32>} : memref<16x64xf32, #tpu.memory_space<vmem>>, vector<16x32xf32>,
      %c0_25 = arith.constant 0 : index
      %c32 = arith.constant 32 : index
      %42 = vector.load %arg6[%c0_25, %c32] : memref<16x64xf32, #tpu.memory_space<vmem>>, vector<16x32xf32>
      tpu.vector_store %arg6[%c0_25, %c32], %39 {strides = array<i32>} : memref<16x64xf32, #tpu.memory_space<vmem>>, vector<16x32xf32>,
    } else {
    }
    return
  }
  func.func @transform_0(%arg0: i32, %arg1: i32) -> (i32, i32, i32) {
    %c0_i32 = arith.constant 0 : i32
    %c0_i32_0 = arith.constant 0 : i32
    return %arg1, %arg0, %c0_i32 : i32, i32, i32
  }
  func.func @transform_1(%arg0: i32, %arg1: i32) -> (i32, i32) {
    %c0_i32 = arith.constant 0 : i32
    %c0_i32_0 = arith.constant 0 : i32
    return %arg0, %c0_i32 : i32, i32
  }
  func.func @transform_2(%arg0: i32, %arg1: i32) -> (i32, i32) {
    %c0_i32 = arith.constant 0 : i32
    %c0_i32_0 = arith.constant 0 : i32
    %c0_i32_1 = arith.constant 0 : i32
    return %c0_i32, %c0_i32_0 : i32, i32
  }
  func.func @transform_3(%arg0: i32, %arg1: i32) -> (i32, i32) {
    %c0_i32 = arith.constant 0 : i32
    %c0_i32_0 = arith.constant 0 : i32
    %c0_i32_1 = arith.constant 0 : i32
    return %c0_i32, %c0_i32_0 : i32, i32
  }
  func.func @transform_4(%arg0: i32, %arg1: i32) -> (i32, i32) {
    %c0_i32 = arith.constant 0 : i32
    %c0_i32_0 = arith.constant 0 : i32
    return %arg0, %c0_i32 : i32, i32
  }
}

</mosaic_0001>

<llo_original>
// kernel: tpu_custom_call.1
$region0: #{tpu_custom_call.1}
  #allocation0 [shape = 'u32[]', space=smem, size = 0x4, offset = 0x4, fixed_abs, tag = 'smem constant byte address 0x4 - core index']
  #allocation1 [shape = 'u32[144,128]{1,0:T(1,128)}', space=vmem, size = 0x12000, scoped, tag = 'internal scratch']
  #allocation2 [shape = 'f32[16,32]{1,0:T(8,128)}', space=vmem, size = 0x2000, scoped, tag = 'scratch operand']
  %s0 = inlined_call_operand.hbm [shape: f32[4,32,32], index: 0, kind: input, shape index: {}]
  %s1 = inlined_call_operand.hbm [shape: f32[32,32], index: 1, kind: input, shape index: {}]
  %s2 = inlined_call_operand.hbm [shape: bf16[32,32], index: 2, kind: input, shape index: {}]
  %s3 = inlined_call_operand.hbm [shape: f32[8,32], index: 3, kind: input, shape index: {}]
  %s4 = inlined_call_operand.hbm [shape: f32[32,64], index: 4, kind: output, shape index: {}]
  %s5 = sld [smem:[#allocation0]]
  $region73: #{tpu_custom_call.1} parent=0
    _
  %s7 = ssub.s32 1, %s5
  %s8 = scalar_select 0, %s7, %s5
  $region1: #{tpu_custom_call.1} parent=0
    #allocation3 [shape = 'u8[16384]{0}', space=vmem, size = 0x4000, scoped, tag = 'input window, operand 0']
    #allocation4 [shape = 's32[2]{0}', space=sflag, size = 0x8, scoped, tag = 'scoped memory for tpu_custom_call.1']
    #allocation5 [shape = 's32[2]{0}', space=sflag, size = 0x8, scoped, tag = 'scoped memory for tpu_custom_call.1']
    #allocation6 [shape = 'u8[16384]{0}', space=vmem, size = 0x4000, scoped, tag = 'input window, operand 1']
    #allocation7 [shape = 's32[2]{0}', space=sflag, size = 0x8, scoped, tag = 'scoped memory for tpu_custom_call.1']
    #allocation8 [shape = 'u8[8192]{0}', space=vmem, size = 0x2000, scoped, tag = 'input window, operand 2, single buffered']
    #allocation9 [shape = 'u8[4096]{0}', space=vmem, size = 0x1000, scoped, tag = 'input window, operand 3, single buffered']
    #allocation10 [shape = 's32[1]{0}', space=sflag, size = 0x4, scoped, tag = 'scoped memory for tpu_custom_call.1']
    #allocation11 [shape = 'u8[16384]{0}', space=vmem, size = 0x4000, scoped, tag = 'output window, operand 0']
    %9 = vsyncpa [#allocation4], 0
    %s10 = scalar_lea.sflag [#allocation4], 1
    %11 = vsyncpa %s10, 0
    %12 = vsyncpa [#allocation7], 0
    %s13 = scalar_lea.sflag [#allocation7], 1
    %14 = vsyncpa %s13, 0
    %15 = vsyncpa [#allocation10], 0
    %16 = vsyncpa [#allocation5], 0
    %s17 = scalar_lea.sflag [#allocation5], 1
    %18 = vsyncpa %s17, 0
    loop: start=0, step=1, limit=10
    $region2: #{tpu_custom_call.1} parent=1 // loop_pre_header
      _
    $region3: #{tpu_custom_call.1} parent=1 // loop_header
      %s20 = sphi 0, %s24
      %p21 = scmp.ge.s32.totalorder %s20, 10
      %s27 = sphi 0, %s39
      %s28 = sphi 0, %s35
      %s29 = sphi 0, %s27
      %s30 = sphi 0, %s28
      %s31 = sphi 0, %s29
      %s32 = sphi 0, %s30
      %s44 = sphi 0, %s46
      %s47 = sphi 0, %s44
      %s48 = sphi 0, %s47
      %s64 = sphi 0, %s48
      %s70 = sphi 0, %s72
      %s73 = sphi 0, %s70
      %s74 = sphi 0, %s73
      %s90 = sphi 0, %s74
      %s94 = sphi 0, %s94
      %s96 = sphi 0, %s94
      %s97 = sphi 0, %s96
      %s111 = sphi 0, %s97
      %s115 = sphi 0, %s115
      %s117 = sphi 0, %s115
      %s118 = sphi 0, %s117
      %s132 = sphi 0, %s118
      %s138 = sphi 0, %s140
      %s141 = sphi 0, %s138
      %s142 = sphi 0, %s141
      %s158 = sphi 0, %s142
    $region4: #{tpu_custom_call.1} parent=1 // loop_header_branch
      %23 = sbr.rel (%p21) target = $region8
    $region5: #{tpu_custom_call.1} parent=1 // loop_body
      %s25 = ssub.s32 %s20, 1
      %s26 = ssub.s32 %s20, 2
      %s33 = sadd.s32 1, %s28
      %p34 = scmp.ge.s32.totalorder %s33, 4
      %s35 = scalar_select %p34, 0, %s33
      %s36 = sadd.s32 1, %s27
      %s37 = scalar_select %p34, %s36, %s27
      %p38 = scmp.ge.s32.totalorder %s37, 2
      %s39 = scalar_select %p38, 0, %s37
      %s40 = ssub.s32 %s28, %s35
      %s41 = ssub.s32 %s27, %s39
      %s42 = sor.u32 %s40, %s41
      %p43 = scmp.eq.s32.totalorder %s42, 0
      %s45 = sadd.s32 %s44, 1
      %s46 = scalar_select %p43, %s44, %s45
      %p49 = pneg %p43
      %p50 = scmp.eq.s32.totalorder %s20, 7
      %p51 = por %p49, %p50
      %p52 = scmp.ne.s32.totalorder %s44, %s47
      %p53 = scmp.eq.s32.totalorder %s20, 0
      %p54 = por %p52, %p53
      %p55 = scmp.ne.s32.totalorder %s44, %s47
      %p56 = scmp.eq.s32.totalorder %s25, 7
      %p57 = por %p55, %p56
      %p58 = scmp.ne.s32.totalorder %s47, %s48
      %p59 = scmp.eq.s32.totalorder %s25, 0
      %p60 = por %p58, %p59
      %p61 = scmp.ne.s32.totalorder %s47, %s48
      %p62 = scmp.eq.s32.totalorder %s26, 7
      %p63 = por %p61, %p62
      %p65 = scmp.ne.s32.totalorder %s48, %s64
      %p66 = scmp.eq.s32.totalorder %s26, 0
      %p67 = por %p65, %p66
      %s68 = ssub.s32 %s27, %s39
      %p69 = scmp.eq.s32.totalorder %s68, 0
      %s71 = sadd.s32 %s70, 1
      %s72 = scalar_select %p69, %s70, %s71
      %p75 = pneg %p69
      %p76 = scmp.eq.s32.totalorder %s20, 7
      %p77 = por %p75, %p76
      %p78 = scmp.ne.s32.totalorder %s70, %s73
      %p79 = scmp.eq.s32.totalorder %s20, 0
      %p80 = por %p78, %p79
      %p81 = scmp.ne.s32.totalorder %s70, %s73
      %p82 = scmp.eq.s32.totalorder %s25, 7
      %p83 = por %p81, %p82
      %p84 = scmp.ne.s32.totalorder %s73, %s74
      %p85 = scmp.eq.s32.totalorder %s25, 0
      %p86 = por %p84, %p85
      %p87 = scmp.ne.s32.totalorder %s73, %s74
      %p88 = scmp.eq.s32.totalorder %s26, 7
      %p89 = por %p87, %p88
      %p91 = scmp.ne.s32.totalorder %s74, %s90
      %p92 = scmp.eq.s32.totalorder %s26, 0
      %p93 = por %p91, %p92
      %s95 = sadd.s32 %s94, 1
      %p98 = scmp.eq.s32.totalorder %s20, 7
      %p99 = scmp.ne.s32.totalorder %s94, %s96
      %p100 = scmp.eq.s32.totalorder %s20, 0
      %p101 = por %p99, %p100
      %p102 = scmp.ne.s32.totalorder %s94, %s96
      %p103 = scmp.eq.s32.totalorder %s25, 7
      %p104 = por %p102, %p103
      %p105 = scmp.ne.s32.totalorder %s96, %s97
      %p106 = scmp.eq.s32.totalorder %s25, 0
      %p107 = por %p105, %p106
      %p108 = scmp.ne.s32.totalorder %s96, %s97
      %p109 = scmp.eq.s32.totalorder %s26, 7
      %p110 = por %p108, %p109
      %p112 = scmp.ne.s32.totalorder %s97, %s111
      %p113 = scmp.eq.s32.totalorder %s26, 0
      %p114 = por %p112, %p113
      %s116 = sadd.s32 %s115, 1
      %p119 = scmp.eq.s32.totalorder %s20, 7
      %p120 = scmp.ne.s32.totalorder %s115, %s117
      %p121 = scmp.eq.s32.totalorder %s20, 0
      %p122 = por %p120, %p121
      %p123 = scmp.ne.s32.totalorder %s115, %s117
      %p124 = scmp.eq.s32.totalorder %s25, 7
      %p125 = por %p123, %p124
      %p126 = scmp.ne.s32.totalorder %s117, %s118
      %p127 = scmp.eq.s32.totalorder %s25, 0
      %p128 = por %p126, %p127
      %p129 = scmp.ne.s32.totalorder %s117, %s118
      %p130 = scmp.eq.s32.totalorder %s26, 7
      %p131 = por %p129, %p130
      %p133 = scmp.ne.s32.totalorder %s118, %s132
      %p134 = scmp.eq.s32.totalorder %s26, 0
      %p135 = por %p133, %p134
      %s136 = ssub.s32 %s27, %s39
      %p137 = scmp.eq.s32.totalorder %s136, 0
      %s139 = sadd.s32 %s138, 1
      %s140 = scalar_select %p137, %s138, %s139
      %p143 = pneg %p137
      %p144 = scmp.eq.s32.totalorder %s20, 7
      %p145 = por %p143, %p144
      %p146 = scmp.ne.s32.totalorder %s138, %s141
      %p147 = scmp.eq.s32.totalorder %s20, 0
      %p148 = por %p146, %p147
      %p149 = scmp.ne.s32.totalorder %s138, %s141
      %p150 = scmp.eq.s32.totalorder %s25, 7
      %p151 = por %p149, %p150
      %p152 = scmp.ne.s32.totalorder %s141, %s142
      %p153 = scmp.eq.s32.totalorder %s25, 0
      %p154 = por %p152, %p153
      %p155 = scmp.ne.s32.totalorder %s141, %s142
      %p156 = scmp.eq.s32.totalorder %s26, 7
      %p157 = por %p155, %p156
      %p159 = scmp.ne.s32.totalorder %s142, %s158
      %p160 = scmp.eq.s32.totalorder %s26, 0
      %p161 = por %p159, %p160
      %p162 = scmp.le.s32.totalorder 1, %s20
      %p163 = scmp.lt.s32.totalorder %s20, 9
      %p164 = pnand %p162, %p163
      %p165 = pneg %p164
      // Predicated region
      $region9: #{tpu_custom_call.1} parent=5 // pred_check
        _
      $region10: #{tpu_custom_call.1} parent=5 // pred_check_branch
        %167 = sbr.rel (%p164) target = $region12
      $region11: #{tpu_custom_call.1} parent=5 // pred_region
        %s168 = ssub.s32 %s20, 1
        // Predicated region
        $region13: #{tpu_custom_call.1} parent=11 // pred_check
          %p169 = pneg %p107
        $region14: #{tpu_custom_call.1} parent=11 // pred_check_branch
          %171 = sbr.rel (%p169) target = $region16
        $region15: #{tpu_custom_call.1} parent=11 // pred_region
          %s173 = ssub.s32 256, 256
          %174 = vsyncadd [#allocation7], %s173
          %s175 = sshll.u32 [#allocation8], 4
          %s176 = int_to_ptr.vmem [resolvable:$true] %s175
          %181 = dma.hbm_to_vmem [thread:$0]  %s2, 256, %s176, [#allocation7], 64, 64, 4
        $region16: #{tpu_custom_call.1} parent=11 // pred_fallthru
          _
        // Predicated region
        $region17: #{tpu_custom_call.1} parent=11 // pred_check
          %p182 = pneg %p128
        $region18: #{tpu_custom_call.1} parent=11 // pred_check_branch
          %184 = sbr.rel (%p182) target = $region20
        $region19: #{tpu_custom_call.1} parent=11 // pred_region
          %s186 = ssub.s32 128, 128
          %187 = vsyncadd [#allocation10], %s186
          %s189 = sshll.u32 [#allocation9], 4
          %s190 = int_to_ptr.vmem [resolvable:$true] %s189
          %192 = dma.hbm_to_vmem [thread:$0]  %s3, 128, %s190, [#allocation10]
        $region20: #{tpu_custom_call.1} parent=11 // pred_fallthru
          _
      $region12: #{tpu_custom_call.1} parent=5 // pred_fallthru
        _
      %p193 = scmp.lt.s32.totalorder %s20, 8
      // Predicated region
      $region21: #{tpu_custom_call.1} parent=5 // pred_check
        %p194 = pneg %p193
      $region22: #{tpu_custom_call.1} parent=5 // pred_check_branch
        %196 = sbr.rel (%p194) target = $region24
      $region23: #{tpu_custom_call.1} parent=5 // pred_region
        // Predicated region
        $region25: #{tpu_custom_call.1} parent=23 // pred_check
          %p197 = pneg %p54
        $region26: #{tpu_custom_call.1} parent=23 // pred_check_branch
          %199 = sbr.rel (%p197) target = $region28
        $region27: #{tpu_custom_call.1} parent=23 // pred_region
          %s200 = sand.u32 %s44, 1
          %s201 = scalar_lea.sflag [#allocation4], %s200
          %s202 = sand.u32 %s44, 1
          %s203 = smul.addr %s202, 16
          %s204 = scalar_lea.vmem [#allocation3], %s203
          %s205 = smul.u32 2, %s27
          %s207 = ssub.s32 256, 256
          %208 = vsyncadd %s201, %s207
          %s209 = smul.addr %s28, 4
          %s210 = sadd.s32 %s205, %s209
          %s211 = smul.addr %s210, 128
          %s212 = scalar_lea.hbm %s0, %s211
          %s213 = sshll.u32 %s204, 4
          %s214 = int_to_ptr.vmem [resolvable:$true] %s213
          %219 = dma.hbm_to_vmem [thread:$0]  %s212, 256, %s214, %s201, 128, 128, 8
        $region28: #{tpu_custom_call.1} parent=23 // pred_fallthru
          _
        // Predicated region
        $region29: #{tpu_custom_call.1} parent=23 // pred_check
          %p220 = pneg %p80
        $region30: #{tpu_custom_call.1} parent=23 // pred_check_branch
          %222 = sbr.rel (%p220) target = $region32
        $region31: #{tpu_custom_call.1} parent=23 // pred_region
          %s223 = sand.u32 %s20, 1
          %s224 = scalar_lea.sflag [#allocation7], %s223
          %s225 = sand.u32 %s70, 1
          %s226 = smul.addr %s225, 16
          %s227 = scalar_lea.vmem [#allocation6], %s226
          %s228 = smul.u32 2, %s27
          %s230 = ssub.s32 256, 256
          %231 = vsyncadd %s224, %s230
          %s232 = smul.addr %s228, 128
          %s233 = scalar_lea.hbm %s1, %s232
          %s234 = sshll.u32 %s227, 4
          %s235 = int_to_ptr.vmem [resolvable:$true] %s234
          %240 = dma.hbm_to_vmem [thread:$0]  %s233, 256, %s235, %s224, 128, 128, 8
        $region32: #{tpu_custom_call.1} parent=23 // pred_fallthru
          _
      $region24: #{tpu_custom_call.1} parent=5 // pred_fallthru
        _
      %p241 = scmp.le.s32.totalorder 1, %s20
      %p242 = scmp.lt.s32.totalorder %s20, 9
      %p243 = pnand %p241, %p242
      %p244 = pneg %p243
      // Predicated region
      $region33: #{tpu_custom_call.1} parent=5 // pred_check
        _
      $region34: #{tpu_custom_call.1} parent=5 // pred_check_branch
        %246 = sbr.rel (%p243) target = $region36
      $region35: #{tpu_custom_call.1} parent=5 // pred_region
        %s247 = ssub.s32 %s20, 1
        %s248 = sand.u32 %s47, 1
        %s249 = scalar_lea.sflag [#allocation4], %s248
        %s250 = sand.u32 %s47, 1
        %s251 = smul.addr %s250, 16
        %s252 = scalar_lea.vmem [#allocation3], %s251
        // Predicated region
        $region37: #{tpu_custom_call.1} parent=35 // pred_check
          %p253 = pneg %p60
        $region38: #{tpu_custom_call.1} parent=35 // pred_check_branch
          %255 = sbr.rel (%p253) target = $region40
        $region39: #{tpu_custom_call.1} parent=35 // pred_region
          %256 = dma.done %s249, 256
        $region40: #{tpu_custom_call.1} parent=35 // pred_fallthru
          _
        %s257 = sand.u32 %s25, 1
        %s258 = scalar_lea.sflag [#allocation7], %s257
        %s259 = sand.u32 %s73, 1
        %s260 = smul.addr %s259, 16
        %s261 = scalar_lea.vmem [#allocation6], %s260
        // Predicated region
        $region41: #{tpu_custom_call.1} parent=35 // pred_check
          %p262 = pneg %p86
        $region42: #{tpu_custom_call.1} parent=35 // pred_check_branch
          %264 = sbr.rel (%p262) target = $region44
        $region43: #{tpu_custom_call.1} parent=35 // pred_region
          %265 = dma.done %s258, 256
        $region44: #{tpu_custom_call.1} parent=35 // pred_fallthru
          _
        // Predicated region
        $region45: #{tpu_custom_call.1} parent=35 // pred_check
          %p266 = pneg %p107
        $region46: #{tpu_custom_call.1} parent=35 // pred_check_branch
          %268 = sbr.rel (%p266) target = $region48
        $region47: #{tpu_custom_call.1} parent=35 // pred_region
          %269 = dma.done [#allocation7], 256
        $region48: #{tpu_custom_call.1} parent=35 // pred_fallthru
          _
        // Predicated region
        $region49: #{tpu_custom_call.1} parent=35 // pred_check
          %p270 = pneg %p128
        $region50: #{tpu_custom_call.1} parent=35 // pred_check_branch
          %272 = sbr.rel (%p270) target = $region52
        $region51: #{tpu_custom_call.1} parent=35 // pred_region
          %273 = dma.done [#allocation10], 128
        $region52: #{tpu_custom_call.1} parent=35 // pred_fallthru
          _
        %s274 = sand.u32 %s47, 1
        %s275 = scalar_lea.sflag [#allocation4], %s274
        %s276 = sand.u32 %s47, 1
        %s277 = smul.addr %s276, 16
        %s278 = scalar_lea.vmem [#allocation3], %s277
        %p279 = pneg %p60
        %p280 = pneg %p57
        %s281 = sand.u32 %s25, 1
        %s282 = scalar_lea.sflag [#allocation7], %s281
        %s283 = sand.u32 %s73, 1
        %s284 = smul.addr %s283, 16
        %s285 = scalar_lea.vmem [#allocation6], %s284
        %p286 = pneg %p86
        %p287 = pneg %p83
        %p288 = pneg %p107
        %p289 = pneg %p104
        %p290 = pneg %p128
        %p291 = pneg %p125
        %p292 = pneg %p154
        %p293 = pneg %p151
        %s294 = sand.u32 %s141, 1
        %s295 = scalar_lea.sflag [#allocation5], %s294
        %s296 = sand.u32 %s141, 1
        %s297 = smul.addr %s296, 16
        %s298 = scalar_lea.vmem [#allocation11], %s297
        %s299 = smul.u32 2, %s29
        %s300 = smul.u32 2, %s29
        %s301 = smul.u32 2, %s29
        %p303 = scmp.eq.s32.totalorder %s30, 0
        // Predicated region
        $region53: #{tpu_custom_call.1} parent=35 // pred_check
          %p304 = pneg %p303
        $region54: #{tpu_custom_call.1} parent=35 // pred_check_branch
          %306 = sbr.rel (%p304) target = $region56
        $region55: #{tpu_custom_call.1} parent=35 // pred_region
          %vm307 = vcmask 261120
          %308 = vst.msk [vmem:[#allocation2] sm:$0xff] %vm307, 0.0
          %309 = vst.msk [vmem:[#allocation2 + $0x8] sm:$0xff] %vm307, 0.0
        $region56: #{tpu_custom_call.1} parent=35 // pred_fallthru
          _
        %v310 = vld [vmem:[#allocation2] sm:$0xff]
        %v311 = vld [vmem:[#allocation2 + $0x8] sm:$0xff]
        %v312 = vld [vmem:[%s252] sm:$0xff]
        %v313 = vld [vmem:[%s252 + $0x8] sm:$0xff]
        %v314 = vadd.f32 %v310, %v312
        %v315 = vadd.f32 %v311, %v313
        %vm316 = vcmask 261120
        %317 = vst.msk [vmem:[#allocation2] sm:$0xff] %vm316, %v314
        %318 = vst.msk [vmem:[#allocation2 + $0x8] sm:$0xff] %vm316, %v315
        %p319 = scmp.eq.s32.totalorder %s30, 3
        // Predicated region
        $region57: #{tpu_custom_call.1} parent=35 // pred_check
          %p320 = pneg %p319
        $region58: #{tpu_custom_call.1} parent=35 // pred_check_branch
          %322 = sbr.rel (%p320) target = $region60
        $region59: #{tpu_custom_call.1} parent=35 // pred_region
          %v323 = vld [vmem:[#allocation2] sm:$0xff]
          %v324 = vld [vmem:[#allocation2 + $0x8] sm:$0xff]
          %v325 = vsel %vm316, %v323, 0.0
          %326 = vadd.xlane.f32.xlu0 %v325
          %v327 = vpop.xlane.xlu0 %326
          %v328 = vsel %vm316, %v324, 0.0
          %329 = vadd.xlane.f32.xlu0 %v328
          %v330 = vpop.xlane.xlu0 %329
          %v331 = vrcp.pop 32.0
          %v332 = vmul.f32 %v327, %v331
          %v333 = vmul.f32 %v330, %v331
          %v334 = vsub.f32 %v323, %v332
          %v335 = vsub.f32 %v324, %v333
          %v336 = vmul.f32 %v334, %v334
          %v337 = vmul.f32 %v335, %v335
          %v338 = vsel %vm316, %v336, 0.0
          %339 = vadd.xlane.f32.xlu0 %v338
          %v340 = vpop.xlane.xlu0 %339
          %v341 = vsel %vm316, %v337, 0.0
          %342 = vadd.xlane.f32.xlu0 %v341
          %v343 = vpop.xlane.xlu0 %342
          %v344 = vmul.f32 %v340, %v331
          %v345 = vmul.f32 %v343, %v331
          %v346 = vadd.f32 %v344, 1e-05
          %v347 = vadd.f32 %v345, 1e-05
          %v348 = vrsqrt.pop %v346
          %v349 = vrsqrt.pop %v347
          %v350 = vmul.f32 %v334, %v348
          %v351 = vmul.f32 %v335, %v349
          %v352 = vld [vmem:[#allocation9 + $0x1] sm:$0x1]
          %v353 = vlaneseq
          %v354 = vshrl.u32 %v353, 7
          %v355 = vsub.s32 0, %v354
          %v356 = vrot.slane %v352, %v355
          %v357 = vmul.f32 %v350, %v356
          %v358 = vmul.f32 %v351, %v356
          %v359 = vld [vmem:[#allocation9 + $0x2] sm:$0x1]
          %v360 = vlaneseq
          %v361 = vshrl.u32 %v360, 7
          %v362 = vsub.s32 0, %v361
          %v363 = vrot.slane %v359, %v362
          %v364 = vadd.f32 %v357, %v363
          %v365 = vadd.f32 %v358, %v363
          %v366 = vpack.c.bf16 %v365, %v364
          %v367 = vld [vmem:[#allocation8] sm:$0xf]
          %v368 = vld [vmem:[#allocation8 + $0x4] sm:$0xf]
          %v369 = vld [vmem:[#allocation8 + $0x8] sm:$0xf]
          %v370 = vld [vmem:[#allocation8 + $0xc] sm:$0xf]
          %v371 = vld [vmem:[#allocation9] sm:$0x1]
          %v372 = vlaneseq
          %v373 = vshrl.u32 %v372, 7
          %v374 = vsub.s32 0, %v373
          %v375 = vrot.slane %v371, %v374
          %v380 = vunpack.c.l.b16 %v367
          %v381 = vunpack.c.l.b16 %v368
          %v382 = vunpack.c.l.b16 %v369
          %v383 = vunpack.c.l.b16 %v370
          %v384 = vpack.c.b16 %v381, %v380
          %v385 = vpack.c.b16 %v383, %v382
          %v389 = vsel %vm316, %v366, 0
          %391 = vmatprep.subr.bf16.mxu0 0
          %392 = vmatpush1.bf16.msra.mxu0 0
          %393 = vmatprep.subr.bf16.mxu0 0
          %394 = vmatpush1.bf16.msra.mxu0 0
          %395 = vmatprep.subr.bf16.mxu0 0
          %396 = vmatpush1.bf16.msra.mxu0 0
          %397 = vmatprep.subr.bf16.mxu0 0
          %398 = vmatpush1.bf16.msra.mxu0 0
          %399 = vmatprep.subr.bf16.mxu0 0
          %400 = vmatpush1.bf16.msra.mxu0 0
          %401 = vmatprep.subr.bf16.mxu0 0
          %402 = vmatpush1.bf16.msra.mxu0 0
          %403 = vmatprep.subr.bf16.mxu0 0
          %404 = vmatpush1.bf16.msra.mxu0 %v385
          %405 = vmatprep.subr.bf16.mxu0 0
          %406 = vmatpush1.bf16.msra.mxu0 %v384
          %407 = vmatprep.subr.bf16.mxu0 0
          %408 = vmatpush2.bf16.msra.mxu0 0
          %409 = vmatprep.subr.bf16.mxu0 0
          %410 = vmatpush2.bf16.msra.mxu0 0
          %411 = vmatprep.subr.bf16.mxu0 0
          %412 = vmatpush2.bf16.msra.mxu0 0
          %413 = vmatprep.subr.bf16.mxu0 0
          %414 = vmatpush2.bf16.msra.mxu0 0
          %415 = vmatprep.subr.bf16.mxu0 0
          %416 = vmatpush2.bf16.msra.mxu0 0
          %417 = vmatprep.subr.bf16.mxu0 0
          %418 = vmatpush2.bf16.msra.mxu0 0
          %419 = vmatprep.subr.bf16.mxu0 0
          %420 = vmatpush2.bf16.msra.mxu0 0
          %421 = vmatprep.subr.bf16.mxu0 0
          %422 = vmatpush2.bf16.msra.mxu0 0
          %423 = vmatprep.mubr.bf16.mxu0 0
          %424 = vmatmul.mubr.bf16.gmra.mxu0 %v389
          %v425 = vpop.f32.mrf.mxu0
          %v426 = vadd.f32 %v375, %v425
          %v427 = vpop.f32.mrf.mxu0
          %v428 = vpop.f32.mrf.mxu0
          %v429 = vadd.f32 %v375, %v428
          %v430 = vpop.f32.mrf.mxu0
          %431 = vdwg.mxu0
          %v432 = vld [vmem:[%s261] sm:$0xff]
          %v433 = vld [vmem:[%s261 + $0x8] sm:$0xff]
          %434 = vst.msk [vmem:[%s298] sm:$0xff] %vm316, %v432
          %435 = vst.msk [vmem:[%s298 + $0x8] sm:$0xff] %vm316, %v433
          %438 = vrot.lane.b32.xlu0 %v426, 32
          %v439 = vpop.permute.xlu0 %438
          %440 = vrot.lane.b32.xlu0 %v429, 32
          %v441 = vpop.permute.xlu0 %440
          %vm444 = vcmask 523520
          %445 = vst.msk [vmem:[%s298] sm:$0xff] %vm444, %v439
          %446 = vst.msk [vmem:[%s298 + $0x8] sm:$0xff] %vm444, %v441
        $region60: #{tpu_custom_call.1} parent=35 // pred_fallthru
          _
        %s447 = sand.u32 %s141, 1
        %s448 = scalar_lea.sflag [#allocation5], %s447
        %s449 = sand.u32 %s141, 1
        %s450 = smul.addr %s449, 16
        %s451 = scalar_lea.vmem [#allocation11], %s450
        // Predicated region
        $region61: #{tpu_custom_call.1} parent=35 // pred_check
          %p452 = pneg %p151
        $region62: #{tpu_custom_call.1} parent=35 // pred_check_branch
          %454 = sbr.rel (%p452) target = $region64
        $region63: #{tpu_custom_call.1} parent=35 // pred_region
          %s455 = smul.u32 2, %s29
          %s457 = ssub.s32 256, 256
          %458 = vsyncadd %s448, %s457
          %s459 = smul.addr %s455, 128
          %s460 = scalar_lea.hbm %s4, %s459
          %s461 = sshll.u32 %s451, 4
          %s462 = int_to_ptr.vmem [resolvable:$true] %s461
          %467 = dma.vmem_to_hbm [thread:$0]  %s462, 256, %s460, %s448, 128, 128, 8
        $region64: #{tpu_custom_call.1} parent=35 // pred_fallthru
          _
      $region36: #{tpu_custom_call.1} parent=5 // pred_fallthru
        _
      %p468 = scmp.le.s32.totalorder 2, %s20
      // Predicated region
      $region65: #{tpu_custom_call.1} parent=5 // pred_check
        %p469 = pneg %p468
      $region66: #{tpu_custom_call.1} parent=5 // pred_check_branch
        %471 = sbr.rel (%p469) target = $region68
      $region67: #{tpu_custom_call.1} parent=5 // pred_region
        %s472 = ssub.s32 %s20, 2
        // Predicated region
        $region69: #{tpu_custom_call.1} parent=67 // pred_check
          %p473 = pneg %p157
        $region70: #{tpu_custom_call.1} parent=67 // pred_check_branch
          %475 = sbr.rel (%p473) target = $region72
        $region71: #{tpu_custom_call.1} parent=67 // pred_region
          %s476 = sand.u32 %s142, 1
          %s477 = scalar_lea.sflag [#allocation5], %s476
          %s478 = sand.u32 %s142, 1
          %s479 = smul.addr %s478, 16
          %s480 = scalar_lea.vmem [#allocation11], %s479
          %481 = dma.done %s477, 256
        $region72: #{tpu_custom_call.1} parent=67 // pred_fallthru
          _
      $region68: #{tpu_custom_call.1} parent=5 // pred_fallthru
        _
    $region6: #{tpu_custom_call.1} parent=1 // loop_footer
      %s24 = sadd.s32 1, %s20
    $region7: #{tpu_custom_call.1} parent=1 // loop_footer_branch
      %19 = sbr.rel target = $region3
    $region8: #{tpu_custom_call.1} parent=1 // loop_exit
      _
    %482 = vsyncpa [#allocation4], 1
    %s483 = scalar_lea.sflag [#allocation4], 1
    %484 = vsyncpa %s483, 1
    %485 = vsyncpa [#allocation7], 1
    %s486 = scalar_lea.sflag [#allocation7], 1
    %487 = vsyncpa %s486, 1
    %488 = vsyncpa [#allocation10], 1
    %489 = vsyncpa [#allocation5], 1
    %s490 = scalar_lea.sflag [#allocation5], 1
    %491 = vsyncpa %s490, 1

</llo_original>
